<compile_context>
chip_gen: v6e
topology: v6e:2x2x1
jax: 0.10.0
libtpu: 0.0.40
codegen_flags: <defaults>
</compile_context>

<pallas_src>
import functools

import jax
import jax.numpy as jnp
from jax.experimental import pallas as pl
from jax.experimental.pallas import tpu as pltpu


def _round_up(x, m):
    return ((x + m - 1) // m) * m


# --------------------------------------------------------------------------- #
# Kernels
# --------------------------------------------------------------------------- #
def _mlp_out1_kernel(x_ref, w1_ref, b1_ref, w2t_ref, b2_ref, o_ref):
    """fc1 (MXU) -> bias+ReLU (VPU) -> fc2 with Out==1 as VPU mul + XLU reduce."""
    # fc1: (TB, In) f32 @ (In, H_pad) f32 -> f32 accumulate on the MXU.
    h = jnp.dot(x_ref[...], w1_ref[...], preferred_element_type=jnp.float32)
    h = jnp.maximum(h + b1_ref[...], 0.0)                       # (TB, H_pad) f32
    # fc2 (Out == 1): multiply by the single W2 column (stored as a (1, H_pad)
    # row) on the VPU and reduce over lanes on the XLU. Output block is (TB, 1),
    # so HBM writeback is 4 B/row instead of 512 B/row for a 128-lane pad.
    out = jnp.sum(h * w2t_ref[...], axis=-1, keepdims=True) + b2_ref[...]
    o_ref[...] = out.astype(o_ref.dtype)


def _mlp_generic_kernel(x_ref, w1_ref, b1_ref, w2_ref, b2_ref, o_ref):
    """General Out > 1 path: two MXU matmuls, lane-dense padded output."""
    h = jnp.dot(x_ref[...], w1_ref[...], preferred_element_type=jnp.float32)
    h = jnp.maximum(h + b1_ref[...], 0.0)
    out = jnp.dot(h, w2_ref[...], preferred_element_type=jnp.float32)
    o_ref[...] = (out + b2_ref[...]).astype(o_ref.dtype)


# --------------------------------------------------------------------------- #
# pallas_call wrappers (jitted, batch tile static)
# --------------------------------------------------------------------------- #
@functools.partial(jax.jit, static_argnames=("tb",))
def _forward_out1(x, w1_p, b1_p, w2t_p, b2_p, *, tb):
    b_pad, in_features = x.shape
    h_pad = w1_p.shape[1]
    grid = (b_pad // tb,)

    cost = pl.CostEstimate(
        flops=2 * b_pad * (in_features * h_pad + h_pad),
        transcendentals=0,
        bytes_accessed=4 * (x.size + w1_p.size + b1_p.size + w2t_p.size
                            + b2_p.size + b_pad),
    )

    return pl.pallas_call(
        _mlp_out1_kernel,
        out_shape=jax.ShapeDtypeStruct((b_pad, 1), jnp.float32),
        grid_spec=pltpu.PrefetchScalarGridSpec(
            num_scalar_prefetch=0,
            grid=grid,
            in_specs=[
                pl.BlockSpec((tb, in_features), lambda i: (i, 0)),    # x tile (pipelined)
                pl.BlockSpec((in_features, h_pad), lambda i: (0, 0)), # W1 resident
                pl.BlockSpec((1, h_pad), lambda i: (0, 0)),           # b1 resident
                pl.BlockSpec((1, h_pad), lambda i: (0, 0)),           # W2 column as row
                pl.BlockSpec((1, 1), lambda i: (0, 0)),               # b2 scalar
            ],
            out_specs=pl.BlockSpec((tb, 1), lambda i: (i, 0)),        # (TB, 1) writeback
        ),
        compiler_params=pltpu.CompilerParams(
            dimension_semantics=("parallel",),   # lets v7x shard batch across 2 TCs
            vmem_limit_bytes=32 * 1024 * 1024,   # footprint is ~MiB-scale; safe everywhere
        ),
        cost_estimate=cost,
    )(x, w1_p, b1_p, w2t_p, b2_p)


@functools.partial(jax.jit, static_argnames=("tb",))
def _forward_generic(x, w1_p, b1_p, w2_p, b2_p, *, tb):
    b_pad, in_features = x.shape
    h_pad = w1_p.shape[1]
    o_pad = w2_p.shape[1]
    grid = (b_pad // tb,)

    cost = pl.CostEstimate(
        flops=2 * b_pad * (in_features * h_pad + h_pad * o_pad),
        transcendentals=0,
        bytes_accessed=4 * (x.size + w1_p.size + b1_p.size + w2_p.size
                            + b2_p.size + b_pad * o_pad),
    )

    return pl.pallas_call(
        _mlp_generic_kernel,
        out_shape=jax.ShapeDtypeStruct((b_pad, o_pad), jnp.float32),
        grid_spec=pltpu.PrefetchScalarGridSpec(
            num_scalar_prefetch=0,
            grid=grid,
            in_specs=[
                pl.BlockSpec((tb, in_features), lambda i: (i, 0)),
                pl.BlockSpec((in_features, h_pad), lambda i: (0, 0)),
                pl.BlockSpec((1, h_pad), lambda i: (0, 0)),
                pl.BlockSpec((h_pad, o_pad), lambda i: (0, 0)),
                pl.BlockSpec((1, o_pad), lambda i: (0, 0)),
            ],
            out_specs=pl.BlockSpec((tb, o_pad), lambda i: (i, 0)),
        ),
        compiler_params=pltpu.CompilerParams(
            dimension_semantics=("parallel",),
            vmem_limit_bytes=32 * 1024 * 1024,
        ),
        cost_estimate=cost,
    )(x, w1_p, b1_p, w2_p, b2_p)


# --------------------------------------------------------------------------- #
# Public API
# --------------------------------------------------------------------------- #
def prepare_params(w1, b1, w2, b2):
    """One-time weight preparation (pad hidden dim to 128 lanes, fix layout).

    Hoisted out of the per-call forward so an inference loop does not re-run
    the pad/convert fusions on every step.

    w1: (In, H), b1: (H,) or (1, H), w2: (H, Out), b2: (Out,) or (1, Out)
    """
    in_features, hidden = w1.shape
    out_features = w2.shape[1]
    h_pad = _round_up(hidden, 128)

    w1_p = jnp.pad(w1.astype(jnp.float32), ((0, 0), (0, h_pad - hidden)))
    b1_p = jnp.pad(jnp.reshape(b1, (1, hidden)).astype(jnp.float32),
                   ((0, 0), (0, h_pad - hidden)))

    if out_features == 1:
        # Single fc2 column stored as a lane-dense (1, H_pad) row for the
        # VPU-multiply + XLU-reduce epilogue.
        w2_p = jnp.pad(jnp.reshape(w2, (1, hidden)).astype(jnp.float32),
                       ((0, 0), (0, h_pad - hidden)))
        b2_p = jnp.reshape(b2, (1, 1)).astype(jnp.float32)
    else:
        o_pad = _round_up(out_features, 128)
        w2_p = jnp.pad(w2.astype(jnp.float32),
                       ((0, h_pad - hidden), (0, o_pad - out_features)))
        b2_p = jnp.pad(jnp.reshape(b2, (1, out_features)).astype(jnp.float32),
                       ((0, 0), (0, o_pad - out_features)))

    return {"w1": w1_p, "b1": b1_p, "w2": w2_p, "b2": b2_p,
            "out_features": out_features}


def simple_nn_forward(x, params, *, block_b=1024, min_pallas_batch=0):
    """Fused SimpleNN forward: relu(x @ W1 + b1) @ W2 + b2.

    x: (B, In) f32; params: output of prepare_params().
    min_pallas_batch: if B is below this, compute with plain XLA ops instead of
    the kernel (set to ~256 for inference loops where tiny batches occur).
    """
    w1_p, b1_p = params["w1"], params["b1"]
    w2_p, b2_p = params["w2"], params["b2"]
    out_features = params["out_features"]

    x = x.astype(jnp.float32)
    batch = x.shape[0]

    if batch < min_pallas_batch:
        # Tiny-batch fallback: a single fused XLA dot beats launch + pad overhead.
        h = jnp.maximum(x @ w1_p + b1_p, 0.0)
        if out_features == 1:
            return jnp.sum(h * w2_p, axis=-1, keepdims=True) + b2_p
        return (h @ w2_p + b2_p)[:, :out_features]

    # Batch tile: multiple of 16 sublane rows; when B fits in one block_b tile,
    # split it so the grid has >= 2 steps (lets v7x use both TensorCores; no-op
    # cost on single-TC v5e/v6e).
    b16 = _round_up(batch, 16)
    if b16 >= 2 * block_b:
        tb = block_b
    else:
        tb = min(b16, max(16, _round_up(-(-b16 // 2), 16)))
    b_pad = _round_up(batch, tb)
    if b_pad != batch:
        x = jnp.pad(x, ((0, b_pad - batch), (0, 0)))

    if out_features == 1:
        out = _forward_out1(x, w1_p, b1_p, w2_p, b2_p, tb=tb)
        return out[:batch]
    out = _forward_generic(x, w1_p, b1_p, w2_p, b2_p, tb=tb)
    return out[:batch, :out_features]


def init_params(key, input_size, hidden_size=64, output_size=1):
    """Deterministic init mimicking PyTorch nn.Linear default (uniform +-1/sqrt(fan_in))."""
    k1, k2, k3, k4 = jax.random.split(key, 4)
    lim1 = 1.0 / (input_size ** 0.5)
    lim2 = 1.0 / (hidden_size ** 0.5)
    w1 = jax.random.uniform(k1, (input_size, hidden_size), jnp.float32, -lim1, lim1)
    b1 = jax.random.uniform(k2, (1, hidden_size), jnp.float32, -lim1, lim1)
    w2 = jax.random.uniform(k3, (hidden_size, output_size), jnp.float32, -lim2, lim2)
    b2 = jax.random.uniform(k4, (1, output_size), jnp.float32, -lim2, lim2)
    return w1, b1, w2, b2


if __name__ == "__main__":
    key = jax.random.PRNGKey(0)
    kx, kp = jax.random.split(key)

    batch = 512          # big enough that the Pallas path (grid of 2 steps) runs
    input_size = 32
    hidden_size = 64
    output_size = 1

    x = jax.random.normal(kx, (batch, input_size), jnp.float32)
    w1, b1, w2, b2 = init_params(kp, input_size, hidden_size, output_size)

    params = prepare_params(w1, b1, w2, b2)          # one-time weight prep
    out = simple_nn_forward(x, params)
    out = jax.block_until_ready(out)

    # Reference check against plain f32 JAX (same semantics as the PyTorch forward).
    h_ref = jnp.maximum(
        jax.lax.dot(x, w1, precision=jax.lax.Precision.HIGHEST) + b1, 0.0)
    ref = jax.lax.dot(h_ref, w2, precision=jax.lax.Precision.HIGHEST) + b2

    assert out.shape == (batch, output_size)
    assert jnp.allclose(out, ref, atol=2e-2, rtol=2e-2), float(jnp.max(jnp.abs(out - ref)))

    print("KERNEL_OK")
</pallas_src>

<mosaic_0001>
module attributes {stable_mosaic.version = 11 : i64} {
  func.func @_mlp_out1_kernel(%arg0: i32, %arg1: memref<256x32xf32, #tpu.memory_space<vmem>>, %arg2: memref<32x128xf32, #tpu.memory_space<vmem>>, %arg3: memref<1x128xf32, #tpu.memory_space<vmem>>, %arg4: memref<1x128xf32, #tpu.memory_space<vmem>>, %arg5: memref<1x1xf32, #tpu.memory_space<vmem>>, %arg6: memref<256x1xf32, #tpu.memory_space<vmem>>) attributes {dimension_semantics = [#tpu.dimension_semantics<parallel>], iteration_bounds = array<i64: 2>, scalar_prefetch = 0 : i64, scratch_operands = 0 : i64, tpu.core_type = #tpu.core_type<tc>, window_params = [{transform_indices = @transform_0, window_bounds = array<i64: 256, 32>}, {pipeline_mode = #tpu.pipeline_mode<synchronous>, transform_indices = @transform_1, window_bounds = array<i64: 32, 128>}, {pipeline_mode = #tpu.pipeline_mode<synchronous>, transform_indices = @transform_2, window_bounds = array<i64: 1, 128>}, {pipeline_mode = #tpu.pipeline_mode<synchronous>, transform_indices = @transform_3, window_bounds = array<i64: 1, 128>}, {pipeline_mode = #tpu.pipeline_mode<synchronous>, transform_indices = @transform_4, window_bounds = array<i64: 1, 1>}, {transform_indices = @transform_5, window_bounds = array<i64: 256, 1>}]} {
    %c0 = arith.constant 0 : index
    %c0_0 = arith.constant 0 : index
    %0 = vector.load %arg1[%c0, %c0_0] : memref<256x32xf32, #tpu.memory_space<vmem>>, vector<256x32xf32>
    %c0_1 = arith.constant 0 : index
    %c0_2 = arith.constant 0 : index
    %1 = vector.load %arg2[%c0_1, %c0_2] : memref<32x128xf32, #tpu.memory_space<vmem>>, vector<32x128xf32>
    %cst = arith.constant dense<0.000000e+00> : vector<256x128xf32>
    %2 = tpu.matmul %0, %1, %cst {dimension_numbers = #tpu.dot_dimension_numbers<[1], [0], [0], [1], [0, 0, 1, 1], [], []>} : vector<256x32xf32>, vector<32x128xf32>, vector<256x128xf32> -> vector<256x128xf32>
    %c0_3 = arith.constant 0 : index
    %c0_4 = arith.constant 0 : index
    %3 = vector.load %arg3[%c0_3, %c0_4] : memref<1x128xf32, #tpu.memory_space<vmem>>, vector<1x128xf32>
    %4 = vector.broadcast %3 : vector<1x128xf32> to vector<256x128xf32>
    %5 = arith.addf %2, %4 : vector<256x128xf32>
    %cst_5 = arith.constant 0.000000e+00 : f32
    %6 = vector.broadcast %cst_5 : f32 to vector<256x128xf32>
    %7 = arith.maximumf %5, %6 : vector<256x128xf32>
    %c0_6 = arith.constant 0 : index
    %c0_7 = arith.constant 0 : index
    %8 = vector.load %arg4[%c0_6, %c0_7] : memref<1x128xf32, #tpu.memory_space<vmem>>, vector<1x128xf32>
    %9 = vector.broadcast %8 : vector<1x128xf32> to vector<256x128xf32>
    %10 = arith.mulf %7, %9 : vector<256x128xf32>
    %cst_8 = arith.constant dense<0.000000e+00> : vector<256xf32>
    %11 = vector.multi_reduction <add>, %10, %cst_8 [1] : vector<256x128xf32> to vector<256xf32>
    %12 = vector.shape_cast %11 : vector<256xf32> to vector<256x1xf32>
    %c0_9 = arith.constant 0 : index
    %c0_10 = arith.constant 0 : index
    %13 = vector.load %arg5[%c0_9, %c0_10] : memref<1x1xf32, #tpu.memory_space<vmem>>, vector<1x1xf32>
    %14 = vector.broadcast %13 : vector<1x1xf32> to vector<256x1xf32>
    %15 = arith.addf %12, %14 : vector<256x1xf32>
    %c0_11 = arith.constant 0 : index
    %c0_12 = arith.constant 0 : index
    %16 = vector.load %arg6[%c0_11, %c0_12] : memref<256x1xf32, #tpu.memory_space<vmem>>, vector<256x1xf32>
    tpu.vector_store %arg6[%c0_11, %c0_12], %15 {strides = array<i32>} : memref<256x1xf32, #tpu.memory_space<vmem>>, vector<256x1xf32>,
    return
  }
  func.func @transform_0(%arg0: i32) -> (i32, i32) {
    %c0_i32 = arith.constant 0 : i32
    %c0_i32_0 = arith.constant 0 : i32
    return %arg0, %c0_i32 : i32, i32
  }
  func.func @transform_1(%arg0: i32) -> (i32, i32) {
    %c0_i32 = arith.constant 0 : i32
    %c0_i32_0 = arith.constant 0 : i32
    %c0_i32_1 = arith.constant 0 : i32
    return %c0_i32, %c0_i32_0 : i32, i32
  }
  func.func @transform_2(%arg0: i32) -> (i32, i32) {
    %c0_i32 = arith.constant 0 : i32
    %c0_i32_0 = arith.constant 0 : i32
    %c0_i32_1 = arith.constant 0 : i32
    return %c0_i32, %c0_i32_0 : i32, i32
  }
  func.func @transform_3(%arg0: i32) -> (i32, i32) {
    %c0_i32 = arith.constant 0 : i32
    %c0_i32_0 = arith.constant 0 : i32
    %c0_i32_1 = arith.constant 0 : i32
    return %c0_i32, %c0_i32_0 : i32, i32
  }
  func.func @transform_4(%arg0: i32) -> (i32, i32) {
    %c0_i32 = arith.constant 0 : i32
    %c0_i32_0 = arith.constant 0 : i32
    %c0_i32_1 = arith.constant 0 : i32
    return %c0_i32, %c0_i32_0 : i32, i32
  }
  func.func @transform_5(%arg0: i32) -> (i32, i32) {
    %c0_i32 = arith.constant 0 : i32
    %c0_i32_0 = arith.constant 0 : i32
    return %arg0, %c0_i32 : i32, i32
  }
}

</mosaic_0001>

<llo_original>
// kernel: _forward_out1.1
$region0: #{_forward_out1.1}
  #allocation0 [shape = 'u32[]', space=smem, size = 0x4, offset = 0x4, fixed_abs, tag = 'smem constant byte address 0x4 - core index']
  #allocation1 [shape = 'u32[144,128]{1,0:T(1,128)}', space=vmem, size = 0x12000, scoped, tag = 'internal scratch']
  #allocation2 [shape = 'f32[1,1]{1,0:T(1,128)S(1)}', space=vmem, size = 0x200, scoped, tag = 'scoped memory for _forward_out1.1']
  %s0 = inlined_call_operand.vmem [shape: f32[512,32], index: 0, kind: input, shape index: {}]
  %s1 = inlined_call_operand.vmem [shape: f32[32,128], index: 1, kind: input, shape index: {}]
  %s2 = inlined_call_operand.vmem [shape: f32[1,128], index: 2, kind: input, shape index: {}]
  %s3 = inlined_call_operand.vmem [shape: f32[1,128], index: 3, kind: input, shape index: {}]
  %s4 = inlined_call_operand.<no memory space> [shape: f32[1,1], index: 4, kind: input, shape index: {}]
  %s5 = inlined_call_operand.vmem [shape: f32[512,1], index: 5, kind: output, shape index: {}]
  %s6 = sld [smem:[#allocation0]]
  $region53: #{_forward_out1.1} parent=0
    _
  %s8 = ssub.s32 1, %s6
  %s9 = scalar_select 0, %s8, %s6
  %v10 = vstv %s4
  %11 = vst [vmem:[#allocation2] sm:$0x1] %v10
  loop: start=0, step=1, limit=4
  $region2: #{_forward_out1.1} parent=0 // loop_pre_header
    _
  $region3: #{_forward_out1.1} parent=0 // loop_header
    %s13 = sphi 0, %s17
    %p14 = scmp.ge.s32.totalorder %s13, 4
    %s23 = sphi 0, %s25
    %s26 = sphi 0, %s23
    %s27 = sphi 0, %s26
    %s43 = sphi 0, %s27
    %s47 = sphi 0, %s47
    %s49 = sphi 0, %s47
    %s50 = sphi 0, %s49
    %s64 = sphi 0, %s50
    %s68 = sphi 0, %s68
    %s70 = sphi 0, %s68
    %s71 = sphi 0, %s70
    %s85 = sphi 0, %s71
    %s89 = sphi 0, %s89
    %s91 = sphi 0, %s89
    %s92 = sphi 0, %s91
    %s106 = sphi 0, %s92
    %s110 = sphi 0, %s110
    %s112 = sphi 0, %s110
    %s113 = sphi 0, %s112
    %s127 = sphi 0, %s113
    %s133 = sphi 0, %s135
    %s136 = sphi 0, %s133
    %s137 = sphi 0, %s136
    %s153 = sphi 0, %s137
  $region4: #{_forward_out1.1} parent=0 // loop_header_branch
    %16 = sbr.rel (%p14) target = $region8
  $region5: #{_forward_out1.1} parent=0 // loop_body
    %s18 = ssub.s32 %s13, 1
    %s19 = ssub.s32 %s13, 2
    %s20 = sadd.s32 %s13, 1
    %s21 = ssub.s32 %s13, %s20
    %p22 = scmp.eq.s32.totalorder %s21, 0
    %s24 = sadd.s32 %s23, 1
    %s25 = scalar_select %p22, %s23, %s24
    %p28 = pneg %p22
    %p29 = scmp.eq.s32.totalorder %s13, 1
    %p30 = por %p28, %p29
    %p31 = scmp.ne.s32.totalorder %s23, %s26
    %p32 = scmp.eq.s32.totalorder %s13, 0
    %p33 = por %p31, %p32
    %p34 = scmp.ne.s32.totalorder %s23, %s26
    %p35 = scmp.eq.s32.totalorder %s18, 1
    %p36 = por %p34, %p35
    %p37 = scmp.ne.s32.totalorder %s26, %s27
    %p38 = scmp.eq.s32.totalorder %s18, 0
    %p39 = por %p37, %p38
    %p40 = scmp.ne.s32.totalorder %s26, %s27
    %p41 = scmp.eq.s32.totalorder %s19, 1
    %p42 = por %p40, %p41
    %p44 = scmp.ne.s32.totalorder %s27, %s43
    %p45 = scmp.eq.s32.totalorder %s19, 0
    %p46 = por %p44, %p45
    %s48 = sadd.s32 %s47, 1
    %p51 = scmp.eq.s32.totalorder %s13, 1
    %p52 = scmp.ne.s32.totalorder %s47, %s49
    %p53 = scmp.eq.s32.totalorder %s13, 0
    %p54 = por %p52, %p53
    %p55 = scmp.ne.s32.totalorder %s47, %s49
    %p56 = scmp.eq.s32.totalorder %s18, 1
    %p57 = por %p55, %p56
    %p58 = scmp.ne.s32.totalorder %s49, %s50
    %p59 = scmp.eq.s32.totalorder %s18, 0
    %p60 = por %p58, %p59
    %p61 = scmp.ne.s32.totalorder %s49, %s50
    %p62 = scmp.eq.s32.totalorder %s19, 1
    %p63 = por %p61, %p62
    %p65 = scmp.ne.s32.totalorder %s50, %s64
    %p66 = scmp.eq.s32.totalorder %s19, 0
    %p67 = por %p65, %p66
    %s69 = sadd.s32 %s68, 1
    %p72 = scmp.eq.s32.totalorder %s13, 1
    %p73 = scmp.ne.s32.totalorder %s68, %s70
    %p74 = scmp.eq.s32.totalorder %s13, 0
    %p75 = por %p73, %p74
    %p76 = scmp.ne.s32.totalorder %s68, %s70
    %p77 = scmp.eq.s32.totalorder %s18, 1
    %p78 = por %p76, %p77
    %p79 = scmp.ne.s32.totalorder %s70, %s71
    %p80 = scmp.eq.s32.totalorder %s18, 0
    %p81 = por %p79, %p80
    %p82 = scmp.ne.s32.totalorder %s70, %s71
    %p83 = scmp.eq.s32.totalorder %s19, 1
    %p84 = por %p82, %p83
    %p86 = scmp.ne.s32.totalorder %s71, %s85
    %p87 = scmp.eq.s32.totalorder %s19, 0
    %p88 = por %p86, %p87
    %s90 = sadd.s32 %s89, 1
    %p93 = scmp.eq.s32.totalorder %s13, 1
    %p94 = scmp.ne.s32.totalorder %s89, %s91
    %p95 = scmp.eq.s32.totalorder %s13, 0
    %p96 = por %p94, %p95
    %p97 = scmp.ne.s32.totalorder %s89, %s91
    %p98 = scmp.eq.s32.totalorder %s18, 1
    %p99 = por %p97, %p98
    %p100 = scmp.ne.s32.totalorder %s91, %s92
    %p101 = scmp.eq.s32.totalorder %s18, 0
    %p102 = por %p100, %p101
    %p103 = scmp.ne.s32.totalorder %s91, %s92
    %p104 = scmp.eq.s32.totalorder %s19, 1
    %p105 = por %p103, %p104
    %p107 = scmp.ne.s32.totalorder %s92, %s106
    %p108 = scmp.eq.s32.totalorder %s19, 0
    %p109 = por %p107, %p108
    %s111 = sadd.s32 %s110, 1
    %p114 = scmp.eq.s32.totalorder %s13, 1
    %p115 = scmp.ne.s32.totalorder %s110, %s112
    %p116 = scmp.eq.s32.totalorder %s13, 0
    %p117 = por %p115, %p116
    %p118 = scmp.ne.s32.totalorder %s110, %s112
    %p119 = scmp.eq.s32.totalorder %s18, 1
    %p120 = por %p118, %p119
    %p121 = scmp.ne.s32.totalorder %s112, %s113
    %p122 = scmp.eq.s32.totalorder %s18, 0
    %p123 = por %p121, %p122
    %p124 = scmp.ne.s32.totalorder %s112, %s113
    %p125 = scmp.eq.s32.totalorder %s19, 1
    %p126 = por %p124, %p125
    %p128 = scmp.ne.s32.totalorder %s113, %s127
    %p129 = scmp.eq.s32.totalorder %s19, 0
    %p130 = por %p128, %p129
    %s131 = ssub.s32 %s13, %s20
    %p132 = scmp.eq.s32.totalorder %s131, 0
    %s134 = sadd.s32 %s133, 1
    %s135 = scalar_select %p132, %s133, %s134
    %p138 = pneg %p132
    %p139 = scmp.eq.s32.totalorder %s13, 1
    %p140 = por %p138, %p139
    %p141 = scmp.ne.s32.totalorder %s133, %s136
    %p142 = scmp.eq.s32.totalorder %s13, 0
    %p143 = por %p141, %p142
    %p144 = scmp.ne.s32.totalorder %s133, %s136
    %p145 = scmp.eq.s32.totalorder %s18, 1
    %p146 = por %p144, %p145
    %p147 = scmp.ne.s32.totalorder %s136, %s137
    %p148 = scmp.eq.s32.totalorder %s18, 0
    %p149 = por %p147, %p148
    %p150 = scmp.ne.s32.totalorder %s136, %s137
    %p151 = scmp.eq.s32.totalorder %s19, 1
    %p152 = por %p150, %p151
    %p154 = scmp.ne.s32.totalorder %s137, %s153
    %p155 = scmp.eq.s32.totalorder %s19, 0
    %p156 = por %p154, %p155
    %p157 = scmp.le.s32.totalorder 1, %s13
    %p158 = scmp.lt.s32.totalorder %s13, 3
    %p159 = pnand %p157, %p158
    %p160 = pneg %p159
    // Predicated region
    $region9: #{_forward_out1.1} parent=5 // pred_check
      _
    $region10: #{_forward_out1.1} parent=5 // pred_check_branch
      %162 = sbr.rel (%p159) target = $region12
    $region11: #{_forward_out1.1} parent=5 // pred_region
      %s163 = ssub.s32 %s13, 1
      // Predicated region
      $region13: #{_forward_out1.1} parent=11 // pred_check
        %p164 = pneg %p60
      $region14: #{_forward_out1.1} parent=11 // pred_check_branch
        %166 = sbr.rel (%p164) target = $region16
      $region15: #{_forward_out1.1} parent=11 // pred_region
        _
      $region16: #{_forward_out1.1} parent=11 // pred_fallthru
        _
      // Predicated region
      $region17: #{_forward_out1.1} parent=11 // pred_check
        %p167 = pneg %p81
      $region18: #{_forward_out1.1} parent=11 // pred_check_branch
        %169 = sbr.rel (%p167) target = $region20
      $region19: #{_forward_out1.1} parent=11 // pred_region
        _
      $region20: #{_forward_out1.1} parent=11 // pred_fallthru
        _
      // Predicated region
      $region21: #{_forward_out1.1} parent=11 // pred_check
        %p170 = pneg %p102
      $region22: #{_forward_out1.1} parent=11 // pred_check_branch
        %172 = sbr.rel (%p170) target = $region24
      $region23: #{_forward_out1.1} parent=11 // pred_region
        _
      $region24: #{_forward_out1.1} parent=11 // pred_fallthru
        _
      // Predicated region
      $region25: #{_forward_out1.1} parent=11 // pred_check
        %p173 = pneg %p123
      $region26: #{_forward_out1.1} parent=11 // pred_check_branch
        %175 = sbr.rel (%p173) target = $region28
      $region27: #{_forward_out1.1} parent=11 // pred_region
        _
      $region28: #{_forward_out1.1} parent=11 // pred_fallthru
        _
    $region12: #{_forward_out1.1} parent=5 // pred_fallthru
      _
    %p176 = scmp.lt.s32.totalorder %s13, 2
    // Predicated region
    $region29: #{_forward_out1.1} parent=5 // pred_check
      %p177 = pneg %p176
    $region30: #{_forward_out1.1} parent=5 // pred_check_branch
      %179 = sbr.rel (%p177) target = $region32
    $region31: #{_forward_out1.1} parent=5 // pred_region
      // Predicated region
      $region33: #{_forward_out1.1} parent=31 // pred_check
        %p180 = pneg %p33
      $region34: #{_forward_out1.1} parent=31 // pred_check_branch
        %182 = sbr.rel (%p180) target = $region36
      $region35: #{_forward_out1.1} parent=31 // pred_region
        %s183 = smul.u32 32, %s13
        %p184 = scmp.lt.s32.totalorder %s183, 63
        %s185 = scalar_select %p184, %s183, 63
        %s186 = smul.addr %s185, 8
        %s187 = scalar_lea.vmem %s0, %s186
        %s188 = smul.u32 32, %s13
      $region36: #{_forward_out1.1} parent=31 // pred_fallthru
        _
    $region32: #{_forward_out1.1} parent=5 // pred_fallthru
      _
    %p189 = scmp.le.s32.totalorder 1, %s13
    %p190 = scmp.lt.s32.totalorder %s13, 3
    %p191 = pnand %p189, %p190
    %p192 = pneg %p191
    // Predicated region
    $region37: #{_forward_out1.1} parent=5 // pred_check
      _
    $region38: #{_forward_out1.1} parent=5 // pred_check_branch
      %194 = sbr.rel (%p191) target = $region40
    $region39: #{_forward_out1.1} parent=5 // pred_region
      %s195 = ssub.s32 %s13, 1
      %s196 = smul.u32 32, %s18
      %p197 = scmp.lt.s32.totalorder %s196, 63
      %s198 = scalar_select %p197, %s196, 63
      %s199 = smul.addr %s198, 8
      %s200 = scalar_lea.vmem %s0, %s199
      %p201 = pneg %p39
      %p202 = pneg %p36
      %p203 = pneg %p60
      %p204 = pneg %p57
      %p205 = pneg %p81
      %p206 = pneg %p78
      %p207 = pneg %p102
      %p208 = pneg %p99
      %p209 = pneg %p123
      %p210 = pneg %p120
      %p211 = pneg %p149
      %p212 = pneg %p146
      %s213 = smul.u32 32, %s18
      %p214 = scmp.lt.s32.totalorder %s213, 63
      %s215 = scalar_select %p214, %s213, 63
      %s216 = smul.addr %s215, 8
      %s217 = scalar_lea.vmem %s5, %s216
      %s218 = smul.u32 32, %s18
      %p219 = scmp.lt.s32.totalorder %s218, 63
      %s220 = scalar_select %p219, %s218, 63
      %s221 = smul.addr %s220, 8
      %s222 = scalar_lea.vmem %s0, %s221
      %s223 = smul.u32 32, %s18
      %s224 = smul.u32 32, %s18
      %p225 = scmp.lt.s32.totalorder %s224, 63
      %s226 = scalar_select %p225, %s224, 63
      %s227 = smul.addr %s226, 8
      %s228 = scalar_lea.vmem %s5, %s227
      %s229 = smul.u32 32, %s18
      %v230 = vld [vmem:[%s222] sm:$0xff]
      %v231 = vld [vmem:[%s222 + $0x8] sm:$0xff]
      %v232 = vld [vmem:[%s222 + $0x10] sm:$0xff]
      %v233 = vld [vmem:[%s222 + $0x18] sm:$0xff]
      %v234 = vld [vmem:[%s222 + $0x20] sm:$0xff]
      %v235 = vld [vmem:[%s222 + $0x28] sm:$0xff]
      %v236 = vld [vmem:[%s222 + $0x30] sm:$0xff]
      %v237 = vld [vmem:[%s222 + $0x38] sm:$0xff]
      %v238 = vld [vmem:[%s222 + $0x40] sm:$0xff]
      %v239 = vld [vmem:[%s222 + $0x48] sm:$0xff]
      %v240 = vld [vmem:[%s222 + $0x50] sm:$0xff]
      %v241 = vld [vmem:[%s222 + $0x58] sm:$0xff]
      %v242 = vld [vmem:[%s222 + $0x60] sm:$0xff]
      %v243 = vld [vmem:[%s222 + $0x68] sm:$0xff]
      %v244 = vld [vmem:[%s222 + $0x70] sm:$0xff]
      %v245 = vld [vmem:[%s222 + $0x78] sm:$0xff]
      %v246 = vld [vmem:[%s222 + $0x80] sm:$0xff]
      %v247 = vld [vmem:[%s222 + $0x88] sm:$0xff]
      %v248 = vld [vmem:[%s222 + $0x90] sm:$0xff]
      %v249 = vld [vmem:[%s222 + $0x98] sm:$0xff]
      %v250 = vld [vmem:[%s222 + $0xa0] sm:$0xff]
      %v251 = vld [vmem:[%s222 + $0xa8] sm:$0xff]
      %v252 = vld [vmem:[%s222 + $0xb0] sm:$0xff]
      %v253 = vld [vmem:[%s222 + $0xb8] sm:$0xff]
      %v254 = vld [vmem:[%s222 + $0xc0] sm:$0xff]
      %v255 = vld [vmem:[%s222 + $0xc8] sm:$0xff]
      %v256 = vld [vmem:[%s222 + $0xd0] sm:$0xff]
      %v257 = vld [vmem:[%s222 + $0xd8] sm:$0xff]
      %v258 = vld [vmem:[%s222 + $0xe0] sm:$0xff]
      %v259 = vld [vmem:[%s222 + $0xe8] sm:$0xff]
      %v260 = vld [vmem:[%s222 + $0xf0] sm:$0xff]
      %v261 = vld [vmem:[%s222 + $0xf8] sm:$0xff]
      %v262 = vld [vmem:[%s1] sm:$0xff]
      %v263 = vld [vmem:[%s1 + $0x8] sm:$0xff]
      %v264 = vld [vmem:[%s1 + $0x10] sm:$0xff]
      %v265 = vld [vmem:[%s1 + $0x18] sm:$0xff]
      %v266 = vld [vmem:[%s2] sm:$0x1]
      %v268 = vlaneseq
      %v269 = vshrl.u32 %v268, 7
      %v270 = vsub.s32 0, %v269
      %v271 = vrot.slane %v266, %v270
      %vm273 = vcmask 261120
      %v275 = vsel %vm273, %v230, 0
      %v278 = vsel %vm273, %v231, 0
      %v281 = vsel %vm273, %v232, 0
      %v284 = vsel %vm273, %v233, 0
      %v287 = vsel %vm273, %v234, 0
      %v290 = vsel %vm273, %v235, 0
      %v293 = vsel %vm273, %v236, 0
      %v296 = vsel %vm273, %v237, 0
      %v299 = vsel %vm273, %v238, 0
      %v302 = vsel %vm273, %v239, 0
      %v305 = vsel %vm273, %v240, 0
      %v308 = vsel %vm273, %v241, 0
      %v311 = vsel %vm273, %v242, 0
      %v314 = vsel %vm273, %v243, 0
      %v317 = vsel %vm273, %v244, 0
      %v320 = vsel %vm273, %v245, 0
      %v323 = vsel %vm273, %v246, 0
      %v326 = vsel %vm273, %v247, 0
      %v329 = vsel %vm273, %v248, 0
      %v332 = vsel %vm273, %v249, 0
      %v335 = vsel %vm273, %v250, 0
      %v338 = vsel %vm273, %v251, 0
      %v341 = vsel %vm273, %v252, 0
      %v344 = vsel %vm273, %v253, 0
      %v347 = vsel %vm273, %v254, 0
      %v350 = vsel %vm273, %v255, 0
      %v353 = vsel %vm273, %v256, 0
      %v356 = vsel %vm273, %v257, 0
      %v359 = vsel %vm273, %v258, 0
      %v362 = vsel %vm273, %v259, 0
      %v365 = vsel %vm273, %v260, 0
      %v368 = vsel %vm273, %v261, 0
      %370 = vmatprep.subr.mxu0 0.0
      %371 = vmatpush1.msra.mxu0 0.0
      %372 = vmatprep.subr.mxu0 0.0
      %373 = vmatpush1.msra.mxu0 0.0
      %374 = vmatprep.subr.mxu0 0.0
      %375 = vmatpush1.msra.mxu0 0.0
      %376 = vmatprep.subr.mxu0 0.0
      %377 = vmatpush1.msra.mxu0 0.0
      %378 = vmatprep.subr.mxu0 0.0
      %379 = vmatpush1.msra.mxu0 0.0
      %380 = vmatprep.subr.mxu0 0.0
      %381 = vmatpush1.msra.mxu0 0.0
      %382 = vmatprep.subr.mxu0 0.0
      %383 = vmatpush1.msra.mxu0 0.0
      %384 = vmatprep.subr.mxu0 0.0
      %385 = vmatpush1.msra.mxu0 0.0
      %386 = vmatprep.subr.mxu0 0.0
      %387 = vmatpush1.msra.mxu0 0.0
      %388 = vmatprep.subr.mxu0 0.0
      %389 = vmatpush1.msra.mxu0 0.0
      %390 = vmatprep.subr.mxu0 0.0
      %391 = vmatpush1.msra.mxu0 0.0
      %392 = vmatprep.subr.mxu0 0.0
      %393 = vmatpush1.msra.mxu0 0.0
      %394 = vmatprep.subr.mxu0 0.0
      %395 = vmatpush1.msra.mxu0 %v265
      %396 = vmatprep.subr.mxu0 0.0
      %397 = vmatpush1.msra.mxu0 %v264
      %398 = vmatprep.subr.mxu0 0.0
      %399 = vmatpush1.msra.mxu0 %v263
      %400 = vmatprep.subr.mxu0 0.0
      %401 = vmatpush1.msra.mxu0 %v262
      %402 = vmatprep.subr.mxu0 0.0
      %403 = vmatpush2.msra.mxu0 0.0
      %404 = vmatprep.subr.mxu0 0.0
      %405 = vmatpush2.msra.mxu0 0.0
      %406 = vmatprep.subr.mxu0 0.0
      %407 = vmatpush2.msra.mxu0 0.0
      %408 = vmatprep.subr.mxu0 0.0
      %409 = vmatpush2.msra.mxu0 0.0
      %410 = vmatprep.subr.mxu0 0.0
      %411 = vmatpush2.msra.mxu0 0.0
      %412 = vmatprep.subr.mxu0 0.0
      %413 = vmatpush2.msra.mxu0 0.0
      %414 = vmatprep.subr.mxu0 0.0
      %415 = vmatpush2.msra.mxu0 0.0
      %416 = vmatprep.subr.mxu0 0.0
      %417 = vmatpush2.msra.mxu0 0.0
      %418 = vmatprep.subr.mxu0 0.0
      %419 = vmatpush2.msra.mxu0 0.0
      %420 = vmatprep.subr.mxu0 0.0
      %421 = vmatpush2.msra.mxu0 0.0
      %422 = vmatprep.subr.mxu0 0.0
      %423 = vmatpush2.msra.mxu0 0.0
      %424 = vmatprep.subr.mxu0 0.0
      %425 = vmatpush2.msra.mxu0 0.0
      %426 = vmatprep.subr.mxu0 0.0
      %427 = vmatpush2.msra.mxu0 0.0
      %428 = vmatprep.subr.mxu0 0.0
      %429 = vmatpush2.msra.mxu0 0.0
      %430 = vmatprep.subr.mxu0 0.0
      %431 = vmatpush2.msra.mxu0 0.0
      %432 = vmatprep.subr.mxu0 0.0
      %433 = vmatpush2.msra.mxu0 0.0
      %434 = vmatprep.mubr.f32.mxu0 0.0
      %435 = vmatmul.mubr.f32.gmra.mxu0 %v275
      %v436 = vpop.f32.mrf.mxu0
      %v437 = vadd.f32 %v271, %v436
      %v438 = vpop.f32.mrf.mxu0
      %439 = vmatprep.mubr.f32.mxu0 0.0
      %440 = vmatmul.mubr.f32.gmra.mxu0 %v278
      %v441 = vpop.f32.mrf.mxu0
      %v442 = vadd.f32 %v271, %v441
      %v443 = vpop.f32.mrf.mxu0
      %444 = vmatprep.mubr.f32.mxu0 0.0
      %445 = vmatmul.mubr.f32.gmra.mxu0 %v281
      %v446 = vpop.f32.mrf.mxu0
      %v447 = vadd.f32 %v271, %v446
      %v448 = vpop.f32.mrf.mxu0
      %449 = vmatprep.mubr.f32.mxu0 0.0
      %450 = vmatmul.mubr.f32.gmra.mxu0 %v284
      %v451 = vpop.f32.mrf.mxu0
      %v452 = vadd.f32 %v271, %v451
      %v453 = vpop.f32.mrf.mxu0
      %454 = vmatprep.mubr.f32.mxu0 0.0
      %455 = vmatmul.mubr.f32.gmra.mxu0 %v287
      %v456 = vpop.f32.mrf.mxu0
      %v457 = vadd.f32 %v271, %v456
      %v458 = vpop.f32.mrf.mxu0
      %459 = vmatprep.mubr.f32.mxu0 0.0
      %460 = vmatmul.mubr.f32.gmra.mxu0 %v290
      %v461 = vpop.f32.mrf.mxu0
      %v462 = vadd.f32 %v271, %v461
      %v463 = vpop.f32.mrf.mxu0
      %464 = vmatprep.mubr.f32.mxu0 0.0
      %465 = vmatmul.mubr.f32.gmra.mxu0 %v293
      %v466 = vpop.f32.mrf.mxu0
      %v467 = vadd.f32 %v271, %v466
      %v468 = vpop.f32.mrf.mxu0
      %469 = vmatprep.mubr.f32.mxu0 0.0
      %470 = vmatmul.mubr.f32.gmra.mxu0 %v296
      %v471 = vpop.f32.mrf.mxu0
      %v472 = vadd.f32 %v271, %v471
      %v473 = vpop.f32.mrf.mxu0
      %474 = vmatprep.mubr.f32.mxu0 0.0
      %475 = vmatmul.mubr.f32.gmra.mxu0 %v299
      %v476 = vpop.f32.mrf.mxu0
      %v477 = vadd.f32 %v271, %v476
      %v478 = vpop.f32.mrf.mxu0
      %479 = vmatprep.mubr.f32.mxu0 0.0
      %480 = vmatmul.mubr.f32.gmra.mxu0 %v302
      %v481 = vpop.f32.mrf.mxu0
      %v482 = vadd.f32 %v271, %v481
      %v483 = vpop.f32.mrf.mxu0
      %484 = vmatprep.mubr.f32.mxu0 0.0
      %485 = vmatmul.mubr.f32.gmra.mxu0 %v305
      %v486 = vpop.f32.mrf.mxu0
      %v487 = vadd.f32 %v271, %v486
      %v488 = vpop.f32.mrf.mxu0
      %489 = vmatprep.mubr.f32.mxu0 0.0
      %490 = vmatmul.mubr.f32.gmra.mxu0 %v308
      %v491 = vpop.f32.mrf.mxu0
      %v492 = vadd.f32 %v271, %v491
      %v493 = vpop.f32.mrf.mxu0
      %494 = vmatprep.mubr.f32.mxu0 0.0
      %495 = vmatmul.mubr.f32.gmra.mxu0 %v311
      %v496 = vpop.f32.mrf.mxu0
      %v497 = vadd.f32 %v271, %v496
      %v498 = vpop.f32.mrf.mxu0
      %499 = vmatprep.mubr.f32.mxu0 0.0
      %500 = vmatmul.mubr.f32.gmra.mxu0 %v314
      %v501 = vpop.f32.mrf.mxu0
      %v502 = vadd.f32 %v271, %v501
      %v503 = vpop.f32.mrf.mxu0
      %504 = vmatprep.mubr.f32.mxu0 0.0
      %505 = vmatmul.mubr.f32.gmra.mxu0 %v317
      %v506 = vpop.f32.mrf.mxu0
      %v507 = vadd.f32 %v271, %v506
      %v508 = vpop.f32.mrf.mxu0
      %509 = vmatprep.mubr.f32.mxu0 0.0
      %510 = vmatmul.mubr.f32.gmra.mxu0 %v320
      %v511 = vpop.f32.mrf.mxu0
      %v512 = vadd.f32 %v271, %v511
      %v513 = vpop.f32.mrf.mxu0
      %514 = vmatprep.mubr.f32.mxu0 0.0
      %515 = vmatmul.mubr.f32.gmra.mxu0 %v323
      %v516 = vpop.f32.mrf.mxu0
      %v517 = vadd.f32 %v271, %v516
      %v518 = vpop.f32.mrf.mxu0
      %519 = vmatprep.mubr.f32.mxu0 0.0
      %520 = vmatmul.mubr.f32.gmra.mxu0 %v326
      %v521 = vpop.f32.mrf.mxu0
      %v522 = vadd.f32 %v271, %v521
      %v523 = vpop.f32.mrf.mxu0
      %524 = vmatprep.mubr.f32.mxu0 0.0
      %525 = vmatmul.mubr.f32.gmra.mxu0 %v329
      %v526 = vpop.f32.mrf.mxu0
      %v527 = vadd.f32 %v271, %v526
      %v528 = vpop.f32.mrf.mxu0
      %529 = vmatprep.mubr.f32.mxu0 0.0
      %530 = vmatmul.mubr.f32.gmra.mxu0 %v332
      %v531 = vpop.f32.mrf.mxu0
      %v532 = vadd.f32 %v271, %v531
      %v533 = vpop.f32.mrf.mxu0
      %534 = vmatprep.mubr.f32.mxu0 0.0
      %535 = vmatmul.mubr.f32.gmra.mxu0 %v335
      %v536 = vpop.f32.mrf.mxu0
      %v537 = vadd.f32 %v271, %v536
      %v538 = vpop.f32.mrf.mxu0
      %539 = vmatprep.mubr.f32.mxu0 0.0
      %540 = vmatmul.mubr.f32.gmra.mxu0 %v338
      %v541 = vpop.f32.mrf.mxu0
      %v542 = vadd.f32 %v271, %v541
      %v543 = vpop.f32.mrf.mxu0
      %544 = vmatprep.mubr.f32.mxu0 0.0
      %545 = vmatmul.mubr.f32.gmra.mxu0 %v341
      %v546 = vpop.f32.mrf.mxu0
      %v547 = vadd.f32 %v271, %v546
      %v548 = vpop.f32.mrf.mxu0
      %549 = vmatprep.mubr.f32.mxu0 0.0
      %550 = vmatmul.mubr.f32.gmra.mxu0 %v344
      %v551 = vpop.f32.mrf.mxu0
      %v552 = vadd.f32 %v271, %v551
      %v553 = vpop.f32.mrf.mxu0
      %554 = vmatprep.mubr.f32.mxu0 0.0
      %555 = vmatmul.mubr.f32.gmra.mxu0 %v347
      %v556 = vpop.f32.mrf.mxu0
      %v557 = vadd.f32 %v271, %v556
      %v558 = vpop.f32.mrf.mxu0
      %559 = vmatprep.mubr.f32.mxu0 0.0
      %560 = vmatmul.mubr.f32.gmra.mxu0 %v350
      %v561 = vpop.f32.mrf.mxu0
      %v562 = vadd.f32 %v271, %v561
      %v563 = vpop.f32.mrf.mxu0
      %564 = vmatprep.mubr.f32.mxu0 0.0
      %565 = vmatmul.mubr.f32.gmra.mxu0 %v353
      %v566 = vpop.f32.mrf.mxu0
      %v567 = vadd.f32 %v271, %v566
      %v568 = vpop.f32.mrf.mxu0
      %569 = vmatprep.mubr.f32.mxu0 0.0
      %570 = vmatmul.mubr.f32.gmra.mxu0 %v356
      %v571 = vpop.f32.mrf.mxu0
      %v572 = vadd.f32 %v271, %v571
      %v573 = vpop.f32.mrf.mxu0
      %574 = vmatprep.mubr.f32.mxu0 0.0
      %575 = vmatmul.mubr.f32.gmra.mxu0 %v359
      %v576 = vpop.f32.mrf.mxu0
      %v577 = vadd.f32 %v271, %v576
      %v578 = vpop.f32.mrf.mxu0
      %579 = vmatprep.mubr.f32.mxu0 0.0
      %580 = vmatmul.mubr.f32.gmra.mxu0 %v362
      %v581 = vpop.f32.mrf.mxu0
      %v582 = vadd.f32 %v271, %v581
      %v583 = vpop.f32.mrf.mxu0
      %584 = vmatprep.mubr.f32.mxu0 0.0
      %585 = vmatmul.mubr.f32.gmra.mxu0 %v365
      %v586 = vpop.f32.mrf.mxu0
      %v587 = vadd.f32 %v271, %v586
      %v588 = vpop.f32.mrf.mxu0
      %589 = vmatprep.mubr.f32.mxu0 0.0
      %590 = vmatmul.mubr.f32.gmra.mxu0 %v368
      %v591 = vpop.f32.mrf.mxu0
      %v592 = vadd.f32 %v271, %v591
      %v593 = vpop.f32.mrf.mxu0
      %594 = vdwg.mxu0
      %v595 = vmax.f32 %v437, 0.0
      %v596 = vmax.f32 %v442, 0.0
      %v597 = vmax.f32 %v447, 0.0
      %v598 = vmax.f32 %v452, 0.0
      %v599 = vmax.f32 %v457, 0.0
      %v600 = vmax.f32 %v462, 0.0
      %v601 = vmax.f32 %v467, 0.0
      %v602 = vmax.f32 %v472, 0.0
      %v603 = vmax.f32 %v477, 0.0
      %v604 = vmax.f32 %v482, 0.0
      %v605 = vmax.f32 %v487, 0.0
      %v606 = vmax.f32 %v492, 0.0
      %v607 = vmax.f32 %v497, 0.0
      %v608 = vmax.f32 %v502, 0.0
      %v609 = vmax.f32 %v507, 0.0
      %v610 = vmax.f32 %v512, 0.0
      %v611 = vmax.f32 %v517, 0.0
      %v612 = vmax.f32 %v522, 0.0
      %v613 = vmax.f32 %v527, 0.0
      %v614 = vmax.f32 %v532, 0.0
      %v615 = vmax.f32 %v537, 0.0
      %v616 = vmax.f32 %v542, 0.0
      %v617 = vmax.f32 %v547, 0.0
      %v618 = vmax.f32 %v552, 0.0
      %v619 = vmax.f32 %v557, 0.0
      %v620 = vmax.f32 %v562, 0.0
      %v621 = vmax.f32 %v567, 0.0
      %v622 = vmax.f32 %v572, 0.0
      %v623 = vmax.f32 %v577, 0.0
      %v624 = vmax.f32 %v582, 0.0
      %v625 = vmax.f32 %v587, 0.0
      %v626 = vmax.f32 %v592, 0.0
      %v627 = vld [vmem:[%s3] sm:$0x1]
      %v629 = vlaneseq
      %v630 = vshrl.u32 %v629, 7
      %v631 = vsub.s32 0, %v630
      %v632 = vrot.slane %v627, %v631
      %v634 = vmul.f32 %v595, %v632
      %v635 = vmul.f32 %v596, %v632
      %v636 = vmul.f32 %v597, %v632
      %v637 = vmul.f32 %v598, %v632
      %v638 = vmul.f32 %v599, %v632
      %v639 = vmul.f32 %v600, %v632
      %v640 = vmul.f32 %v601, %v632
      %v641 = vmul.f32 %v602, %v632
      %v642 = vmul.f32 %v603, %v632
      %v643 = vmul.f32 %v604, %v632
      %v644 = vmul.f32 %v605, %v632
      %v645 = vmul.f32 %v606, %v632
      %v646 = vmul.f32 %v607, %v632
      %v647 = vmul.f32 %v608, %v632
      %v648 = vmul.f32 %v609, %v632
      %v649 = vmul.f32 %v610, %v632
      %v650 = vmul.f32 %v611, %v632
      %v651 = vmul.f32 %v612, %v632
      %v652 = vmul.f32 %v613, %v632
      %v653 = vmul.f32 %v614, %v632
      %v654 = vmul.f32 %v615, %v632
      %v655 = vmul.f32 %v616, %v632
      %v656 = vmul.f32 %v617, %v632
      %v657 = vmul.f32 %v618, %v632
      %v658 = vmul.f32 %v619, %v632
      %v659 = vmul.f32 %v620, %v632
      %v660 = vmul.f32 %v621, %v632
      %v661 = vmul.f32 %v622, %v632
      %v662 = vmul.f32 %v623, %v632
      %v663 = vmul.f32 %v624, %v632
      %v664 = vmul.f32 %v625, %v632
      %v665 = vmul.f32 %v626, %v632
      %666 = vadd.xlane.f32.xlu0 %v634
      %v667 = vpop.xlane.xlu0 %666
      %668 = vadd.xlane.f32.xlu0 %v635
      %v669 = vpop.xlane.xlu0 %668
      %670 = vadd.xlane.f32.xlu0 %v636
      %v671 = vpop.xlane.xlu0 %670
      %672 = vadd.xlane.f32.xlu0 %v637
      %v673 = vpop.xlane.xlu0 %672
      %674 = vadd.xlane.f32.xlu0 %v638
      %v675 = vpop.xlane.xlu0 %674
      %676 = vadd.xlane.f32.xlu0 %v639
      %v677 = vpop.xlane.xlu0 %676
      %678 = vadd.xlane.f32.xlu0 %v640
      %v679 = vpop.xlane.xlu0 %678
      %680 = vadd.xlane.f32.xlu0 %v641
      %v681 = vpop.xlane.xlu0 %680
      %682 = vadd.xlane.f32.xlu0 %v642
      %v683 = vpop.xlane.xlu0 %682
      %684 = vadd.xlane.f32.xlu0 %v643
      %v685 = vpop.xlane.xlu0 %684
      %686 = vadd.xlane.f32.xlu0 %v644
      %v687 = vpop.xlane.xlu0 %686
      %688 = vadd.xlane.f32.xlu0 %v645
      %v689 = vpop.xlane.xlu0 %688
      %690 = vadd.xlane.f32.xlu0 %v646
      %v691 = vpop.xlane.xlu0 %690
      %692 = vadd.xlane.f32.xlu0 %v647
      %v693 = vpop.xlane.xlu0 %692
      %694 = vadd.xlane.f32.xlu0 %v648
      %v695 = vpop.xlane.xlu0 %694
      %696 = vadd.xlane.f32.xlu0 %v649
      %v697 = vpop.xlane.xlu0 %696
      %698 = vadd.xlane.f32.xlu0 %v650
      %v699 = vpop.xlane.xlu0 %698
      %700 = vadd.xlane.f32.xlu0 %v651
      %v701 = vpop.xlane.xlu0 %700
      %702 = vadd.xlane.f32.xlu0 %v652
      %v703 = vpop.xlane.xlu0 %702
      %704 = vadd.xlane.f32.xlu0 %v653
      %v705 = vpop.xlane.xlu0 %704
      %706 = vadd.xlane.f32.xlu0 %v654
      %v707 = vpop.xlane.xlu0 %706
      %708 = vadd.xlane.f32.xlu0 %v655
      %v709 = vpop.xlane.xlu0 %708
      %710 = vadd.xlane.f32.xlu0 %v656
      %v711 = vpop.xlane.xlu0 %710
      %712 = vadd.xlane.f32.xlu0 %v657
      %v713 = vpop.xlane.xlu0 %712
      %714 = vadd.xlane.f32.xlu0 %v658
      %v715 = vpop.xlane.xlu0 %714
      %716 = vadd.xlane.f32.xlu0 %v659
      %v717 = vpop.xlane.xlu0 %716
      %718 = vadd.xlane.f32.xlu0 %v660
      %v719 = vpop.xlane.xlu0 %718
      %720 = vadd.xlane.f32.xlu0 %v661
      %v721 = vpop.xlane.xlu0 %720
      %722 = vadd.xlane.f32.xlu0 %v662
      %v723 = vpop.xlane.xlu0 %722
      %724 = vadd.xlane.f32.xlu0 %v663
      %v725 = vpop.xlane.xlu0 %724
      %726 = vadd.xlane.f32.xlu0 %v664
      %v727 = vpop.xlane.xlu0 %726
      %728 = vadd.xlane.f32.xlu0 %v665
      %v729 = vpop.xlane.xlu0 %728
      %v730 = vld [vmem:[#allocation2] sm:$0x1]
      %v732 = vlaneseq
      %v733 = vshrl.u32 %v732, 7
      %v734 = vsub.s32 0, %v733
      %v735 = vrot.slane %v730, %v734
      %v737 = vadd.f32 %v667, %v735
      %v738 = vadd.f32 %v669, %v735
      %v739 = vadd.f32 %v671, %v735
      %v740 = vadd.f32 %v673, %v735
      %v741 = vadd.f32 %v675, %v735
      %v742 = vadd.f32 %v677, %v735
      %v743 = vadd.f32 %v679, %v735
      %v744 = vadd.f32 %v681, %v735
      %v745 = vadd.f32 %v683, %v735
      %v746 = vadd.f32 %v685, %v735
      %v747 = vadd.f32 %v687, %v735
      %v748 = vadd.f32 %v689, %v735
      %v749 = vadd.f32 %v691, %v735
      %v750 = vadd.f32 %v693, %v735
      %v751 = vadd.f32 %v695, %v735
      %v752 = vadd.f32 %v697, %v735
      %v753 = vadd.f32 %v699, %v735
      %v754 = vadd.f32 %v701, %v735
      %v755 = vadd.f32 %v703, %v735
      %v756 = vadd.f32 %v705, %v735
      %v757 = vadd.f32 %v707, %v735
      %v758 = vadd.f32 %v709, %v735
      %v759 = vadd.f32 %v711, %v735
      %v760 = vadd.f32 %v713, %v735
      %v761 = vadd.f32 %v715, %v735
      %v762 = vadd.f32 %v717, %v735
      %v763 = vadd.f32 %v719, %v735
      %v764 = vadd.f32 %v721, %v735
      %v765 = vadd.f32 %v723, %v735
      %v766 = vadd.f32 %v725, %v735
      %v767 = vadd.f32 %v727, %v735
      %v768 = vadd.f32 %v729, %v735
      %vm769 = vcmask 7168
      %770 = vst.msk [vmem:[%s228] sm:$0xff] %vm769, %v737
      %771 = vst.msk [vmem:[%s228 + $0x8] sm:$0xff] %vm769, %v738
      %772 = vst.msk [vmem:[%s228 + $0x10] sm:$0xff] %vm769, %v739
      %773 = vst.msk [vmem:[%s228 + $0x18] sm:$0xff] %vm769, %v740
      %774 = vst.msk [vmem:[%s228 + $0x20] sm:$0xff] %vm769, %v741
      %775 = vst.msk [vmem:[%s228 + $0x28] sm:$0xff] %vm769, %v742
      %776 = vst.msk [vmem:[%s228 + $0x30] sm:$0xff] %vm769, %v743
      %777 = vst.msk [vmem:[%s228 + $0x38] sm:$0xff] %vm769, %v744
      %778 = vst.msk [vmem:[%s228 + $0x40] sm:$0xff] %vm769, %v745
      %779 = vst.msk [vmem:[%s228 + $0x48] sm:$0xff] %vm769, %v746
      %780 = vst.msk [vmem:[%s228 + $0x50] sm:$0xff] %vm769, %v747
      %781 = vst.msk [vmem:[%s228 + $0x58] sm:$0xff] %vm769, %v748
      %782 = vst.msk [vmem:[%s228 + $0x60] sm:$0xff] %vm769, %v749
      %783 = vst.msk [vmem:[%s228 + $0x68] sm:$0xff] %vm769, %v750
      %784 = vst.msk [vmem:[%s228 + $0x70] sm:$0xff] %vm769, %v751
      %785 = vst.msk [vmem:[%s228 + $0x78] sm:$0xff] %vm769, %v752
      %786 = vst.msk [vmem:[%s228 + $0x80] sm:$0xff] %vm769, %v753
      %787 = vst.msk [vmem:[%s228 + $0x88] sm:$0xff] %vm769, %v754
      %788 = vst.msk [vmem:[%s228 + $0x90] sm:$0xff] %vm769, %v755
      %789 = vst.msk [vmem:[%s228 + $0x98] sm:$0xff] %vm769, %v756
      %790 = vst.msk [vmem:[%s228 + $0xa0] sm:$0xff] %vm769, %v757
      %791 = vst.msk [vmem:[%s228 + $0xa8] sm:$0xff] %vm769, %v758
      %792 = vst.msk [vmem:[%s228 + $0xb0] sm:$0xff] %vm769, %v759
      %793 = vst.msk [vmem:[%s228 + $0xb8] sm:$0xff] %vm769, %v760
      %794 = vst.msk [vmem:[%s228 + $0xc0] sm:$0xff] %vm769, %v761
      %795 = vst.msk [vmem:[%s228 + $0xc8] sm:$0xff] %vm769, %v762
      %796 = vst.msk [vmem:[%s228 + $0xd0] sm:$0xff] %vm769, %v763
      %797 = vst.msk [vmem:[%s228 + $0xd8] sm:$0xff] %vm769, %v764
      %798 = vst.msk [vmem:[%s228 + $0xe0] sm:$0xff] %vm769, %v765
      %799 = vst.msk [vmem:[%s228 + $0xe8] sm:$0xff] %vm769, %v766
      %800 = vst.msk [vmem:[%s228 + $0xf0] sm:$0xff] %vm769, %v767
      %801 = vst.msk [vmem:[%s228 + $0xf8] sm:$0xff] %vm769, %v768
      %s802 = smul.u32 32, %s18
      %p803 = scmp.lt.s32.totalorder %s802, 63
      %s804 = scalar_select %p803, %s802, 63
      %s805 = smul.addr %s804, 8
      %s806 = scalar_lea.vmem %s5, %s805
      // Predicated region
      $region41: #{_forward_out1.1} parent=39 // pred_check
        %p807 = pneg %p146
      $region42: #{_forward_out1.1} parent=39 // pred_check_branch
        %809 = sbr.rel (%p807) target = $region44
      $region43: #{_forward_out1.1} parent=39 // pred_region
        %s810 = smul.u32 32, %s18
      $region44: #{_forward_out1.1} parent=39 // pred_fallthru
        _
    $region40: #{_forward_out1.1} parent=5 // pred_fallthru
      _
    %p811 = scmp.le.s32.totalorder 2, %s13
    // Predicated region
    $region45: #{_forward_out1.1} parent=5 // pred_check
      %p812 = pneg %p811
    $region46: #{_forward_out1.1} parent=5 // pred_check_branch
      %814 = sbr.rel (%p812) target = $region48
    $region47: #{_forward_out1.1} parent=5 // pred_region
      %s815 = ssub.s32 %s13, 2
      // Predicated region
      $region49: #{_forward_out1.1} parent=47 // pred_check
        %p816 = pneg %p152
      $region50: #{_forward_out1.1} parent=47 // pred_check_branch
        %818 = sbr.rel (%p816) target = $region52
      $region51: #{_forward_out1.1} parent=47 // pred_region
        %s819 = smul.u32 32, %s19
        %p820 = scmp.lt.s32.totalorder %s819, 63
        %s821 = scalar_select %p820, %s819, 63
        %s822 = smul.addr %s821, 8
        %s823 = scalar_lea.vmem %s5, %s822
      $region52: #{_forward_out1.1} parent=47 // pred_fallthru
        _
    $region48: #{_forward_out1.1} parent=5 // pred_fallthru
      _
  $region6: #{_forward_out1.1} parent=0 // loop_footer
    %s17 = sadd.s32 1, %s13
  $region7: #{_forward_out1.1} parent=0 // loop_footer_branch
    %12 = sbr.rel target = $region3
  $region8: #{_forward_out1.1} parent=0 // loop_exit
    _

</llo_original>
